<compile_context>
chip_gen: v5e
topology: v5e:2x2
jax: 0.10.0
libtpu: 0.0.40
codegen_flags: <defaults>
</compile_context>

<pallas_src>
import jax
import jax.numpy as jnp
from jax import lax
from jax.experimental import pallas as pl
from jax.experimental.pallas import tpu as pltpu


def _dcm2kp_kernel(coord_ref, r_ref, map_ref, stats_ref):
    # coord_ref : (2, HW)   f32      -- row 0: x (j) coords, row 1: y (i) coords
    # r_ref     : (T, HW)   in-dtype -- flattened heatmaps for T (b, c) rows
    # map_ref   : (T, HW)   in-dtype -- normalized map_val_all
    # stats_ref : (T, 128)  f32      -- lane 0: round(kp_x/zeta), 1: round(kp_y/zeta), 2: zeta
    r = r_ref[...].astype(jnp.float32)                      # cast in-register

    r_min = jnp.min(r, axis=1, keepdims=True)               # (T, 1)
    r_max = jnp.max(r, axis=1, keepdims=True)               # (T, 1)
    m = (r - r_min) / r_max                                 # exact divide (matches reference)
    map_ref[...] = m.astype(map_ref.dtype)

    jj = coord_ref[0:1, :]                                  # (1, HW) column coord (x)
    ii = coord_ref[1:2, :]                                  # (1, HW) row    coord (y)

    zeta = jnp.sum(m, axis=1, keepdims=True)                # (T, 1)
    kp_x = jnp.round(jnp.sum(m * jj, axis=1, keepdims=True) / zeta)
    kp_y = jnp.round(jnp.sum(m * ii, axis=1, keepdims=True) / zeta)

    lane = lax.broadcasted_iota(jnp.int32, stats_ref.shape, 1)
    stats_ref[...] = jnp.where(
        lane == 0, kp_x,
        jnp.where(lane == 1, kp_y,
                  jnp.where(lane == 2, zeta, 0.0)))


def _round_up(x, m):
    return -(-x // m) * m


def _vmem_plan():
    """Return (buffer_budget_bytes, vmem_limit_bytes) sized per TPU generation."""
    try:
        phys = int(pltpu.get_tpu_info().vmem_capacity_bytes)
    except Exception:
        phys = 64 << 20                        # conservative (v7x-sized) fallback
    buf_budget = min(phys // 2, 48 << 20)      # v5e/v6e: 48 MiB, v7x: 32 MiB
    vmem_limit = min((phys * 3) // 4, buf_budget + (16 << 20))
    return buf_budget, vmem_limit


def _choose_row_tile(rows, hw, elem_bytes, buf_budget):
    """Row tile: multiple of 8, sized so double-buffered blocks fit the budget."""
    # double-buffered (input + map output) blocks + lane-dense stats block
    per_row = 2 * (2 * hw * elem_bytes + 128 * 4)
    tile = max(8, (buf_budget // per_row) // 8 * 8)
    rows8 = _round_up(rows, 8)
    if rows8 > 8:
        # keep >= 2 grid steps so rows can be split across TensorCores
        tile = min(tile, _round_up(rows8 // 2, 8))
    return min(tile, rows8)


def detection_confidence_map_to_keypoint(combined_hm_preds, cur_batch=None):
    """combined_hm_preds: (B, C, H, W). Returns (map_val_all, keypoint, zeta)."""
    B, C, H, W = combined_hm_preds.shape
    if cur_batch is None:
        cur_batch = B
    assert cur_batch == B, "cur_batch must equal the leading batch dim"

    rows, HW = B * C, H * W
    x = combined_hm_preds.reshape(rows, HW)          # native dtype; cast happens in-kernel

    buf_budget, vmem_limit = _vmem_plan()
    tile = _choose_row_tile(rows, HW, x.dtype.itemsize, buf_budget)
    rows_p = _round_up(rows, tile)
    if rows_p != rows:
        x = jnp.pad(x, ((0, rows_p - rows), (0, 0)))  # padded rows are discarded below

    # Pixel coordinates, computed once (stays VMEM-resident across grid steps):
    # row 0 = column index (j / x), row 1 = row index (i / y).
    idx = jnp.arange(HW, dtype=jnp.int32)
    coords = jnp.stack([(idx % W).astype(jnp.float32),
                        (idx // W).astype(jnp.float32)], axis=0)          # (2, HW)

    map_flat, stats = pl.pallas_call(
        _dcm2kp_kernel,
        out_shape=(
            jax.ShapeDtypeStruct((rows_p, HW), x.dtype),       # map_val_all
            jax.ShapeDtypeStruct((rows_p, 128), jnp.float32),  # [kp_x, kp_y, zeta, 0...]
        ),
        grid=(rows_p // tile,),
        in_specs=[
            pl.BlockSpec((2, HW), lambda i: (0, 0)),           # resident coords
            pl.BlockSpec((tile, HW), lambda i: (i, 0)),
        ],
        out_specs=(
            pl.BlockSpec((tile, HW), lambda i: (i, 0)),
            pl.BlockSpec((tile, 128), lambda i: (i, 0)),
        ),
        compiler_params=pltpu.CompilerParams(
            dimension_semantics=("parallel",),
            vmem_limit_bytes=vmem_limit),
    )(coords, x)

    map_val_all = map_flat[:rows].reshape(B, C, H, W)
    keypoint = stats[:rows, 0:2].reshape(B, C, 2)
    zeta = stats[:rows, 2].reshape(B, C)
    return map_val_all, keypoint, zeta


def _reference(x):
    # Pure-JAX mirror of the PyTorch forward (vectorized).
    B, C, H, W = x.shape
    r = x.astype(jnp.float32)
    dk_min = r.min(axis=(2, 3), keepdims=True)
    dk_max = r.max(axis=(2, 3), keepdims=True)
    map_val_all = (r - dk_min) / dk_max
    zeta = map_val_all.sum(axis=(2, 3))
    jj = jnp.arange(W, dtype=jnp.float32)[None, None, None, :]
    ii = jnp.arange(H, dtype=jnp.float32)[None, None, :, None]
    kp_x = (map_val_all * jj).sum(axis=(2, 3))
    kp_y = (map_val_all * ii).sum(axis=(2, 3))
    keypoint = jnp.stack([jnp.round(kp_x / zeta), jnp.round(kp_y / zeta)],
                         axis=-1)
    return map_val_all, keypoint, zeta


if __name__ == "__main__":
    B, C, H, W = 2, 4, 16, 16

    key = jax.random.PRNGKey(0)
    combined_hm_preds = jax.random.normal(key, (B, C, H, W), dtype=jnp.float32)

    map_val_all, keypoint, zeta = detection_confidence_map_to_keypoint(
        combined_hm_preds, B)
    jax.block_until_ready((map_val_all, keypoint, zeta))

    ref_map, ref_kp, ref_zeta = _reference(combined_hm_preds)

    assert map_val_all.shape == (B, C, H, W)
    assert keypoint.shape == (B, C, 2)
    assert zeta.shape == (B, C)
    assert jnp.allclose(map_val_all, ref_map, atol=1e-5, rtol=1e-5)
    assert jnp.allclose(zeta, ref_zeta, atol=1e-4, rtol=1e-5)
    assert jnp.allclose(keypoint, ref_kp, atol=1e-5, rtol=1e-5)

    print("KERNEL_OK")
</pallas_src>

<mosaic_0001>
module attributes {stable_mosaic.version = 11 : i64} {
  func.func @_dcm2kp_kernel(%arg0: i32, %arg1: memref<2x256xf32, #tpu.memory_space<vmem>>, %arg2: memref<8x256xf32, #tpu.memory_space<vmem>>, %arg3: memref<8x256xf32, #tpu.memory_space<vmem>>, %arg4: memref<8x128xf32, #tpu.memory_space<vmem>>) attributes {dimension_semantics = [#tpu.dimension_semantics<parallel>], iteration_bounds = array<i64: 1>, scalar_prefetch = 0 : i64, scratch_operands = 0 : i64, tpu.core_type = #tpu.core_type<tc>, window_params = [{pipeline_mode = #tpu.pipeline_mode<synchronous>, transform_indices = @transform_0, window_bounds = array<i64: 2, 256>}, {transform_indices = @transform_1, window_bounds = array<i64: 8, 256>}, {transform_indices = @transform_2, window_bounds = array<i64: 8, 256>}, {transform_indices = @transform_3, window_bounds = array<i64: 8, 128>}]} {
    %c0 = arith.constant 0 : index
    %c0_0 = arith.constant 0 : index
    %0 = vector.load %arg2[%c0, %c0_0] : memref<8x256xf32, #tpu.memory_space<vmem>>, vector<8x256xf32>
    %cst = arith.constant dense<0x7F800000> : vector<8xf32>
    %1 = vector.multi_reduction <minimumf>, %0, %cst [1] : vector<8x256xf32> to vector<8xf32>
    %2 = vector.shape_cast %1 : vector<8xf32> to vector<8x1xf32>
    %cst_1 = arith.constant dense<0xFF800000> : vector<8xf32>
    %3 = vector.multi_reduction <maximumf>, %0, %cst_1 [1] : vector<8x256xf32> to vector<8xf32>
    %4 = vector.shape_cast %3 : vector<8xf32> to vector<8x1xf32>
    %5 = vector.broadcast %2 : vector<8x1xf32> to vector<8x256xf32>
    %6 = arith.subf %0, %5 : vector<8x256xf32>
    %7 = vector.broadcast %4 : vector<8x1xf32> to vector<8x256xf32>
    %8 = arith.divf %6, %7 : vector<8x256xf32>
    %c0_2 = arith.constant 0 : index
    %c0_3 = arith.constant 0 : index
    %9 = vector.load %arg3[%c0_2, %c0_3] : memref<8x256xf32, #tpu.memory_space<vmem>>, vector<8x256xf32>
    tpu.vector_store %arg3[%c0_2, %c0_3], %8 {strides = array<i32>} : memref<8x256xf32, #tpu.memory_space<vmem>>, vector<8x256xf32>,
    %c0_4 = arith.constant 0 : index
    %c0_5 = arith.constant 0 : index
    %10 = vector.load %arg1[%c0_4, %c0_5] : memref<2x256xf32, #tpu.memory_space<vmem>>, vector<1x256xf32>
    %c1 = arith.constant 1 : index
    %c0_6 = arith.constant 0 : index
    %11 = vector.load %arg1[%c1, %c0_6] : memref<2x256xf32, #tpu.memory_space<vmem>>, vector<1x256xf32>
    %cst_7 = arith.constant dense<0.000000e+00> : vector<8xf32>
    %12 = vector.multi_reduction <add>, %8, %cst_7 [1] : vector<8x256xf32> to vector<8xf32>
    %13 = vector.shape_cast %12 : vector<8xf32> to vector<8x1xf32>
    %14 = vector.broadcast %10 : vector<1x256xf32> to vector<8x256xf32>
    %15 = arith.mulf %8, %14 : vector<8x256xf32>
    %cst_8 = arith.constant dense<0.000000e+00> : vector<8xf32>
    %16 = vector.multi_reduction <add>, %15, %cst_8 [1] : vector<8x256xf32> to vector<8xf32>
    %17 = vector.shape_cast %16 : vector<8xf32> to vector<8x1xf32>
    %18 = arith.divf %17, %13 : vector<8x1xf32>
    %19 = math.roundeven %18 : vector<8x1xf32>
    %20 = vector.broadcast %11 : vector<1x256xf32> to vector<8x256xf32>
    %21 = arith.mulf %8, %20 : vector<8x256xf32>
    %cst_9 = arith.constant dense<0.000000e+00> : vector<8xf32>
    %22 = vector.multi_reduction <add>, %21, %cst_9 [1] : vector<8x256xf32> to vector<8xf32>
    %23 = vector.shape_cast %22 : vector<8xf32> to vector<8x1xf32>
    %24 = arith.divf %23, %13 : vector<8x1xf32>
    %25 = math.roundeven %24 : vector<8x1xf32>
    %26 = tpu.iota {dimensions = array<i32: 1>} : vector<8x128xi32>
    %c0_i32 = arith.constant 0 : i32
    %27 = vector.broadcast %c0_i32 : i32 to vector<8x128xi32>
    %28 = arith.cmpi eq, %26, %27 : vector<8x128xi32>
    %c1_i32 = arith.constant 1 : i32
    %29 = vector.broadcast %c1_i32 : i32 to vector<8x128xi32>
    %30 = arith.cmpi eq, %26, %29 : vector<8x128xi32>
    %c2_i32 = arith.constant 2 : i32
    %31 = vector.broadcast %c2_i32 : i32 to vector<8x128xi32>
    %32 = arith.cmpi eq, %26, %31 : vector<8x128xi32>
    %cst_10 = arith.constant 0.000000e+00 : f32
    %33 = vector.shape_cast %13 : vector<8x1xf32> to vector<8x1xf32>
    %34 = vector.broadcast %33 : vector<8x1xf32> to vector<8x128xf32>
    %35 = vector.broadcast %cst_10 : f32 to vector<8x128xf32>
    %36 = arith.select %32, %34, %35 : vector<8x128xi1>, vector<8x128xf32>
    %37 = vector.shape_cast %25 : vector<8x1xf32> to vector<8x1xf32>
    %38 = vector.broadcast %37 : vector<8x1xf32> to vector<8x128xf32>
    %39 = arith.select %30, %38, %36 : vector<8x128xi1>, vector<8x128xf32>
    %40 = vector.shape_cast %19 : vector<8x1xf32> to vector<8x1xf32>
    %41 = vector.broadcast %40 : vector<8x1xf32> to vector<8x128xf32>
    %42 = arith.select %28, %41, %39 : vector<8x128xi1>, vector<8x128xf32>
    %c0_11 = arith.constant 0 : index
    %c0_12 = arith.constant 0 : index
    %43 = vector.load %arg4[%c0_11, %c0_12] : memref<8x128xf32, #tpu.memory_space<vmem>>, vector<8x128xf32>
    tpu.vector_store %arg4[%c0_11, %c0_12], %42 {strides = array<i32>} : memref<8x128xf32, #tpu.memory_space<vmem>>, vector<8x128xf32>,
    return
  }
  func.func @transform_0(%arg0: i32) -> (i32, i32) {
    %c0_i32 = arith.constant 0 : i32
    %c0_i32_0 = arith.constant 0 : i32
    %c0_i32_1 = arith.constant 0 : i32
    return %c0_i32, %c0_i32_0 : i32, i32
  }
  func.func @transform_1(%arg0: i32) -> (i32, i32) {
    %c0_i32 = arith.constant 0 : i32
    %c0_i32_0 = arith.constant 0 : i32
    return %arg0, %c0_i32 : i32, i32
  }
  func.func @transform_2(%arg0: i32) -> (i32, i32) {
    %c0_i32 = arith.constant 0 : i32
    %c0_i32_0 = arith.constant 0 : i32
    return %arg0, %c0_i32 : i32, i32
  }
  func.func @transform_3(%arg0: i32) -> (i32, i32) {
    %c0_i32 = arith.constant 0 : i32
    %c0_i32_0 = arith.constant 0 : i32
    return %arg0, %c0_i32 : i32, i32
  }
}

</mosaic_0001>

<llo_original>
// kernel: tpu_custom_call.1
$region0: #{tpu_custom_call.1}
  #allocation0 [shape = 'u32[]', space=smem, size = 0x4, offset = 0x4, fixed_abs, tag = 'smem constant byte address 0x4 - core index']
  #allocation1 [shape = 'u32[72,128]{1,0:T(1,128)}', space=vmem, size = 0x9000, scoped, tag = 'internal scratch']
  %s0 = inlined_call_operand.hbm [shape: f32[2,256], index: 0, kind: input, shape index: {}]
  %s1 = inlined_call_operand.hbm [shape: f32[8,256], index: 1, kind: input, shape index: {}]
  %s2 = inlined_call_operand.hbm [shape: f32[8,256], index: 2, kind: output, shape index: {0}]
  %s3 = inlined_call_operand.hbm [shape: f32[8,128], index: 3, kind: output, shape index: {1}]
  %4 = xla_tuple %s2, %s3
  %s5 = sld [smem:[#allocation0]]
  $region34: #{tpu_custom_call.1} parent=0
    _
  %s7 = ssub.s32 1, %s5
  %s8 = scalar_select 0, %s7, %s5
  $region1: #{tpu_custom_call.1} parent=0
    #allocation2 [shape = 'u8[2048]{0}', space=vmem, size = 0x800, scoped, tag = 'input window, operand 0, single buffered']
    #allocation3 [shape = 's32[1]{0}', space=sflag, size = 0x4, scoped, tag = 'scoped memory for tpu_custom_call.1']
    #allocation4 [shape = 's32[1]{0}', space=sflag, size = 0x4, scoped, tag = 'scoped memory for tpu_custom_call.1']
    #allocation5 [shape = 'u8[8192]{0}', space=vmem, size = 0x2000, scoped, tag = 'input window, operand 1, single buffered']
    #allocation6 [shape = 's32[1]{0}', space=sflag, size = 0x4, scoped, tag = 'scoped memory for tpu_custom_call.1']
    #allocation7 [shape = 'u8[8192]{0}', space=vmem, size = 0x2000, scoped, tag = 'output window, operand 0, single buffered']
    #allocation8 [shape = 'u8[4096]{0}', space=vmem, size = 0x1000, scoped, tag = 'output window, operand 1, single buffered']
    #allocation9 [shape = 's32[1]{0}', space=sflag, size = 0x4, scoped, tag = 'scoped memory for tpu_custom_call.1']
    %9 = vsyncpa [#allocation3], 0
    %10 = vsyncpa [#allocation6], 0
    %11 = vsyncpa [#allocation4], 0
    %12 = vsyncpa [#allocation9], 0
    // Predicated region
    $region2: #{tpu_custom_call.1} parent=1 // pred_check
      _
    $region3: #{tpu_custom_call.1} parent=1 // pred_check_branch
      %14 = sbr.rel (0) target = $region5
    $region4: #{tpu_custom_call.1} parent=1 // pred_region
      %16 = vsyncadd [#allocation3], 0
      %s18 = sshll.u32 %s0, 4
      %s19 = int_to_ptr.hbm [resolvable:$true] %s18
      %s20 = sshll.u32 [#allocation2], 4
      %s21 = int_to_ptr.vmem [resolvable:$true] %s20
      %23 = dma.hbm_to_vmem [thread:$0]  %s19, 64, %s21, [#allocation3]
    $region5: #{tpu_custom_call.1} parent=1 // pred_fallthru
      _
    // Predicated region
    $region6: #{tpu_custom_call.1} parent=1 // pred_check
      _
    $region7: #{tpu_custom_call.1} parent=1 // pred_check_branch
      %25 = sbr.rel (0) target = $region9
    $region8: #{tpu_custom_call.1} parent=1 // pred_region
      %27 = vsyncadd [#allocation6], 0
      %s29 = sshll.u32 %s1, 4
      %s30 = int_to_ptr.hbm [resolvable:$true] %s29
      %s31 = sshll.u32 [#allocation5], 4
      %s32 = int_to_ptr.vmem [resolvable:$true] %s31
      %34 = dma.hbm_to_vmem [thread:$0]  %s30, 256, %s32, [#allocation6]
    $region9: #{tpu_custom_call.1} parent=1 // pred_fallthru
      _
    // Predicated region
    $region10: #{tpu_custom_call.1} parent=1 // pred_check
      _
    $region11: #{tpu_custom_call.1} parent=1 // pred_check_branch
      %36 = sbr.rel (0) target = $region13
    $region12: #{tpu_custom_call.1} parent=1 // pred_region
      %38 = dma.done [#allocation3], 64
    $region13: #{tpu_custom_call.1} parent=1 // pred_fallthru
      _
    // Predicated region
    $region14: #{tpu_custom_call.1} parent=1 // pred_check
      _
    $region15: #{tpu_custom_call.1} parent=1 // pred_check_branch
      %40 = sbr.rel (0) target = $region17
    $region16: #{tpu_custom_call.1} parent=1 // pred_region
      %42 = dma.done [#allocation6], 256
    $region17: #{tpu_custom_call.1} parent=1 // pred_fallthru
      _
    %v43 = vld [vmem:[#allocation5] sm:$0xff]
    %v44 = vld [vmem:[#allocation5 + $0x8] sm:$0xff]
    %v45 = vmin.f32 %v43, %v44
    %46 = vmin.xlane.f32.xlu0 %v45
    %v47 = vpop.xlane.xlu0 %46
    %v48 = vmax.f32 %v43, %v44
    %49 = vmax.xlane.f32.xlu0 %v48
    %v50 = vpop.xlane.xlu0 %49
    %v51 = vsub.f32 %v43, %v47
    %v52 = vsub.f32 %v44, %v47
    %v53 = vrcp.pop %v50
    %v54 = vmul.f32 %v50, %v53
    %v55 = vsub.f32 1.0, %v54
    %v56 = vmul.f32 %v53, %v55
    %v57 = vadd.f32 %v53, %v56
    %vm58 = vweird.f32 %v50
    %vm59 = vweird.f32 %v53
    %vm60 = vmor %vm58, %vm59
    %v61 = vsel %vm60, %v53, %v57
    %v62 = vand.u32 2147483647, %v50
    %vm63 = vcmp.eq.f32.partialorder %v62, 8.507059e+37
    %v64 = vand.u32 %v50, 2147483648
    %v65 = vor.u32 1.1754944e-38, %v64
    %v66 = vsel %vm63, %v65, %v61
    %v67 = vmul.f32 %v51, %v66
    %v68 = vmul.f32 %v52, %v66
    %69 = vst [vmem:[#allocation7] sm:$0xff] %v67
    %70 = vst [vmem:[#allocation7 + $0x8] sm:$0xff] %v68
    %v71 = vld [vmem:[#allocation2] ss:$2 sm:$0x3]
    %s72 = scalar_lea.vmem [#allocation2], 1
    %v73 = vld [vmem:[%s72] ss:$2 sm:$0x3]
    %v74 = vadd.f32 %v67, %v68
    %75 = vadd.xlane.f32.xlu0 %v74
    %v76 = vpop.xlane.xlu0 %75
    %v78 = vperm.slane %v71, 0
    %v79 = vperm.slane %v71, 1
    %v82 = vmul.f32 %v67, %v78
    %v83 = vmul.f32 %v68, %v79
    %v84 = vadd.f32 %v82, %v83
    %85 = vadd.xlane.f32.xlu0 %v84
    %v86 = vpop.xlane.xlu0 %85
    %v87 = vrcp.pop %v76
    %v88 = vmul.f32 %v76, %v87
    %v89 = vsub.f32 1.0, %v88
    %v90 = vmul.f32 %v87, %v89
    %v91 = vadd.f32 %v87, %v90
    %vm92 = vweird.f32 %v76
    %vm93 = vweird.f32 %v87
    %vm94 = vmor %vm92, %vm93
    %v95 = vsel %vm94, %v87, %v91
    %v96 = vand.u32 2147483647, %v76
    %vm97 = vcmp.eq.f32.partialorder %v96, 8.507059e+37
    %v98 = vand.u32 %v76, 2147483648
    %v99 = vor.u32 1.1754944e-38, %v98
    %v100 = vsel %vm97, %v99, %v95
    %v101 = vmul.f32 %v86, %v100
    %v102 = vround.ne.pseudo %v101
    %v104 = vperm.slane %v73, 0
    %v105 = vperm.slane %v73, 1
    %v108 = vmul.f32 %v67, %v104
    %v109 = vmul.f32 %v68, %v105
    %v110 = vadd.f32 %v108, %v109
    %111 = vadd.xlane.f32.xlu0 %v110
    %v112 = vpop.xlane.xlu0 %111
    %v113 = vmul.f32 %v112, %v100
    %v114 = vround.ne.pseudo %v113
    %v115 = vlaneseq
    %v116 = vand.u32 %v115, 127
    %vm117 = vcmp.eq.s32.totalorder %v116, 0
    %vm118 = vcmp.eq.s32.totalorder %v116, 1
    %vm119 = vcmp.eq.s32.totalorder %v116, 2
    %v120 = vsel %vm119, %v76, 0.0
    %v121 = vsel %vm118, %v114, %v120
    %v122 = vsel %vm117, %v102, %v121
    %123 = vst [vmem:[#allocation8] sm:$0xff] %v122
    // Predicated region
    $region18: #{tpu_custom_call.1} parent=1 // pred_check
      _
    $region19: #{tpu_custom_call.1} parent=1 // pred_check_branch
      %125 = sbr.rel (0) target = $region21
    $region20: #{tpu_custom_call.1} parent=1 // pred_region
      %127 = vsyncadd [#allocation4], 0
      %s129 = sshll.u32 [#allocation7], 4
      %s130 = int_to_ptr.vmem [resolvable:$true] %s129
      %s131 = sshll.u32 %s2, 4
      %s132 = int_to_ptr.hbm [resolvable:$true] %s131
      %134 = dma.vmem_to_hbm [thread:$0]  %s130, 256, %s132, [#allocation4]
    $region21: #{tpu_custom_call.1} parent=1 // pred_fallthru
      _
    // Predicated region
    $region22: #{tpu_custom_call.1} parent=1 // pred_check
      _
    $region23: #{tpu_custom_call.1} parent=1 // pred_check_branch
      %136 = sbr.rel (0) target = $region25
    $region24: #{tpu_custom_call.1} parent=1 // pred_region
      %138 = vsyncadd [#allocation9], 0
      %s140 = sshll.u32 [#allocation8], 4
      %s141 = int_to_ptr.vmem [resolvable:$true] %s140
      %s142 = sshll.u32 %s3, 4
      %s143 = int_to_ptr.hbm [resolvable:$true] %s142
      %145 = dma.vmem_to_hbm [thread:$0]  %s141, 128, %s143, [#allocation9]
    $region25: #{tpu_custom_call.1} parent=1 // pred_fallthru
      _
    // Predicated region
    $region26: #{tpu_custom_call.1} parent=1 // pred_check
      _
    $region27: #{tpu_custom_call.1} parent=1 // pred_check_branch
      %147 = sbr.rel (0) target = $region29
    $region28: #{tpu_custom_call.1} parent=1 // pred_region
      %149 = dma.done [#allocation4], 256
    $region29: #{tpu_custom_call.1} parent=1 // pred_fallthru
      _
    // Predicated region
    $region30: #{tpu_custom_call.1} parent=1 // pred_check
      _
    $region31: #{tpu_custom_call.1} parent=1 // pred_check_branch
      %151 = sbr.rel (0) target = $region33
    $region32: #{tpu_custom_call.1} parent=1 // pred_region
      %153 = dma.done [#allocation9], 128
    $region33: #{tpu_custom_call.1} parent=1 // pred_fallthru
      _
    %154 = vsyncpa [#allocation3], 1
    %155 = vsyncpa [#allocation6], 1
    %156 = vsyncpa [#allocation4], 1
    %157 = vsyncpa [#allocation9], 1

</llo_original>
